<compile_context>
chip_gen: v6e
topology: v6e:2x2x1
jax: 0.10.0
libtpu: 0.0.40
codegen_flags: <defaults>
</compile_context>

<pallas_src>
import math
import functools

import jax
import jax.numpy as jnp
from jax.experimental import pallas as pl
from jax.experimental.pallas import tpu as pltpu


def _round_up(x: int, m: int) -> int:
    return ((x + m - 1) // m) * m


def _gcn_body(adj_ref, inp_ref, w_ref, b_ref, out_ref, acc_ref):
    """One (i, j, k) grid step of the fused GCN forward."""
    k = pl.program_id(2)

    @pl.when(k == 0)
    def _init():
        acc_ref[...] = jnp.zeros_like(acc_ref)

    # support_k = input[k_tile] @ weight[:, j_tile]   (recomputed per K-tile;
    # weight tile is resident across k since its index_map ignores k).
    support_k = jnp.dot(inp_ref[...], w_ref[...],
                        preferred_element_type=jnp.float32)
    # acc += adj[i_tile, k_tile] @ support_k
    acc_ref[...] += jnp.dot(adj_ref[...], support_k.astype(adj_ref.dtype),
                            preferred_element_type=jnp.float32)

    @pl.when(k == pl.num_programs(2) - 1)
    def _finalize():
        result = acc_ref[...]
        if b_ref is not None:
            result = result + b_ref[...]        # (1, TN) f32, broadcasts over rows
        out_ref[...] = result.astype(out_ref.dtype)


def _gcn_kernel(adj_ref, inp_ref, w_ref, out_ref, acc_ref):
    _gcn_body(adj_ref, inp_ref, w_ref, None, out_ref, acc_ref)


def _gcn_kernel_bias(adj_ref, inp_ref, w_ref, b_ref, out_ref, acc_ref):
    _gcn_body(adj_ref, inp_ref, w_ref, b_ref, out_ref, acc_ref)


@functools.partial(jax.jit, static_argnames=("compute_dtype",))
def graph_convolution(inp, weight, adj, bias=None, *, compute_dtype=jnp.float32):
    """Pallas forward of GraphConvolution.

    inp:    (N, F_in)       float32
    weight: (F_in, F_out)   float32
    adj:    (N, N)          float32
    bias:   optional (1, 1, F_out) float32 (torch parameter shape)
    compute_dtype: dtype of the MXU operands (f32 or bf16); accumulation is
        always f32.
    returns (N, F_out) with inp's dtype.
    """
    n, f_in = inp.shape
    f_out = weight.shape[1]
    out_dtype = inp.dtype

    # ---- tile sizes (MXU/lane aligned; capped by the padded problem size) ----
    tm = min(256, _round_up(n, 8))          # sublane dim of adj/out tiles
    tk = min(512, _round_up(n, 128))        # lane dim of adj tile, sublane of inp tile
    tn = min(256, _round_up(f_out, 128))    # lane dim of weight/out/bias tiles
    f_in_pad = _round_up(f_in, 128)

    n_pad_m = _round_up(n, tm)
    n_pad_k = _round_up(n, tk)
    f_out_pad = _round_up(f_out, tn)

    cdt = jnp.dtype(compute_dtype)

    # ---- zero-pad to lane-dense, tile-aligned shapes (wrapper-side glue) ----
    adj_p = jnp.pad(adj, ((0, n_pad_m - n), (0, n_pad_k - n))).astype(cdt)
    inp_p = jnp.pad(inp, ((0, n_pad_k - n), (0, f_in_pad - f_in))).astype(cdt)
    w_p = jnp.pad(weight, ((0, f_in_pad - f_in), (0, f_out_pad - f_out))).astype(cdt)

    grid = (n_pad_m // tm, f_out_pad // tn, n_pad_k // tk)

    in_specs = [
        pl.BlockSpec((tm, tk), lambda i, j, k: (i, k)),        # adj tile
        pl.BlockSpec((tk, f_in_pad), lambda i, j, k: (k, 0)),  # input rows for K-tile
        pl.BlockSpec((f_in_pad, tn), lambda i, j, k: (0, j)),  # weight col tile (resident)
    ]
    operands = [adj_p, inp_p, w_p]
    kernel = _gcn_kernel

    if bias is not None:
        # Keep bias in f32; it is only added once, into the f32 accumulator.
        b_p = jnp.pad(bias.reshape(1, f_out).astype(jnp.float32),
                      ((0, 0), (0, f_out_pad - f_out)))
        in_specs.append(pl.BlockSpec((1, tn), lambda i, j, k: (0, j)))
        operands.append(b_p)
        kernel = _gcn_kernel_bias

    # ---- VMEM budget: 2x (double buffer) per input/output tile + f32 acc ----
    itemsize = cdt.itemsize
    tile_bytes = ((tm * tk + tk * f_in_pad + f_in_pad * tn + tn) * itemsize
                  + tm * tn * jnp.dtype(out_dtype).itemsize)
    vmem_limit = int(min(128 * 1024 * 1024,
                         max(32 * 1024 * 1024, 3 * tile_bytes + tm * tn * 4)))

    out_p = pl.pallas_call(
        kernel,
        out_shape=jax.ShapeDtypeStruct((n_pad_m, f_out_pad), out_dtype),
        grid=grid,
        in_specs=in_specs,
        out_specs=pl.BlockSpec((tm, tn), lambda i, j, k: (i, j)),
        scratch_shapes=[pltpu.VMEM((tm, tn), jnp.float32)],
        compiler_params=pltpu.CompilerParams(
            dimension_semantics=("parallel", "parallel", "arbitrary"),
            vmem_limit_bytes=vmem_limit,
        ),
    )(*operands)

    return out_p[:n, :f_out]


def init_params(key, in_features, out_features, bias=False):
    """Matches GraphConvolution.reset_parameters: uniform(-stdv, stdv),
    stdv = 1 / sqrt(out_features). Deterministic given `key`."""
    stdv = 1.0 / math.sqrt(out_features)
    kw, kb = jax.random.split(key)
    weight = jax.random.uniform(
        kw, (in_features, out_features), jnp.float32, minval=-stdv, maxval=stdv)
    b = None
    if bias:
        b = jax.random.uniform(
            kb, (1, 1, out_features), jnp.float32, minval=-stdv, maxval=stdv)
    return weight, b


if __name__ == "__main__":
    key = jax.random.PRNGKey(0)
    k_in, k_adj, k_par, k_in2, k_adj2, k_par2 = jax.random.split(key, 6)

    # ---- Small shapes consistent with the GCN head usage ----
    num_nodes, in_features, out_features = 8, 32, 16
    inp = jax.random.normal(k_in, (num_nodes, in_features), jnp.float32)
    adj = jax.random.normal(k_adj, (num_nodes, num_nodes), jnp.float32)
    weight, bias = init_params(k_par, in_features, out_features, bias=True)

    # f32, no bias
    out = jax.block_until_ready(graph_convolution(inp, weight, adj, None))
    ref = adj @ (inp @ weight)
    assert out.shape == (num_nodes, out_features)
    assert jnp.allclose(out, ref, atol=1e-4, rtol=1e-4)

    # f32, with bias (exercises the bias path)
    out_b = jax.block_until_ready(graph_convolution(inp, weight, adj, bias))
    ref_b = ref + bias.reshape(1, out_features)
    assert jnp.allclose(out_b, ref_b, atol=1e-4, rtol=1e-4)

    # bf16 operands with f32 accumulation (compare against a bf16-emulated ref)
    out_bf = jax.block_until_ready(
        graph_convolution(inp, weight, adj, bias, compute_dtype=jnp.bfloat16))
    support_bf = jnp.dot(inp.astype(jnp.bfloat16), weight.astype(jnp.bfloat16),
                         preferred_element_type=jnp.float32).astype(jnp.bfloat16)
    ref_bf = jnp.dot(adj.astype(jnp.bfloat16), support_bf,
                     preferred_element_type=jnp.float32) + bias.reshape(1, out_features)
    assert jnp.allclose(out_bf, ref_bf, atol=2e-2, rtol=2e-2)

    # ---- Moderate shapes: exercises multi-tile grid + K-reduction + bias ----
    n2, fi2, fo2 = 640, 300, 80          # grid becomes (3, 1, 2)
    inp2 = jax.random.normal(k_in2, (n2, fi2), jnp.float32)
    adj2 = jax.random.normal(k_adj2, (n2, n2), jnp.float32) / math.sqrt(n2)
    w2, b2 = init_params(k_par2, fi2, fo2, bias=True)
    out2 = jax.block_until_ready(graph_convolution(inp2, w2, adj2, b2))
    ref2 = (jnp.dot(adj2, jnp.dot(inp2, w2, precision="highest"),
                    precision="highest") + b2.reshape(1, fo2))
    assert out2.shape == (n2, fo2)
    assert jnp.allclose(out2, ref2, atol=5e-3, rtol=5e-3)

    print("KERNEL_OK")
</pallas_src>

<mosaic_0001>
module attributes {stable_mosaic.version = 11 : i64} {
  func.func @_gcn_kernel(%arg0: i32, %arg1: i32, %arg2: i32, %arg3: memref<8x128xf32, #tpu.memory_space<vmem>>, %arg4: memref<128x128xf32, #tpu.memory_space<vmem>>, %arg5: memref<128x128xf32, #tpu.memory_space<vmem>>, %arg6: memref<8x128xf32, #tpu.memory_space<vmem>>, %arg7: memref<8x128xf32, #tpu.memory_space<vmem>>) attributes {dimension_semantics = [#tpu.dimension_semantics<parallel>, #tpu.dimension_semantics<parallel>, #tpu.dimension_semantics<arbitrary>], iteration_bounds = array<i64: 1, 1, 1>, scalar_prefetch = 0 : i64, scratch_operands = 1 : i64, tpu.core_type = #tpu.core_type<tc>, window_params = [{transform_indices = @transform_0, window_bounds = array<i64: 8, 128>}, {transform_indices = @transform_1, window_bounds = array<i64: 128, 128>}, {transform_indices = @transform_2, window_bounds = array<i64: 128, 128>}, {transform_indices = @transform_3, window_bounds = array<i64: 8, 128>}]} {
    %c0_i32 = arith.constant 0 : i32
    %0 = arith.cmpi eq, %arg2, %c0_i32 : i32
    %1 = arith.extui %0 : i1 to i32
    %c0_i32_0 = arith.constant 0 : i32
    %2 = arith.cmpi ne, %1, %c0_i32_0 : i32
    scf.if %2 {
      %cst_13 = arith.constant 0.000000e+00 : f32
      %14 = vector.broadcast %cst_13 : f32 to vector<8x128xf32>
      %c0_14 = arith.constant 0 : index
      %c0_15 = arith.constant 0 : index
      %15 = vector.load %arg7[%c0_14, %c0_15] : memref<8x128xf32, #tpu.memory_space<vmem>>, vector<8x128xf32>
      tpu.vector_store %arg7[%c0_14, %c0_15], %14 {strides = array<i32>} : memref<8x128xf32, #tpu.memory_space<vmem>>, vector<8x128xf32>,
    } else {
    }
    %c0 = arith.constant 0 : index
    %c0_1 = arith.constant 0 : index
    %3 = vector.load %arg4[%c0, %c0_1] : memref<128x128xf32, #tpu.memory_space<vmem>>, vector<128x128xf32>
    %c0_2 = arith.constant 0 : index
    %c0_3 = arith.constant 0 : index
    %4 = vector.load %arg5[%c0_2, %c0_3] : memref<128x128xf32, #tpu.memory_space<vmem>>, vector<128x128xf32>
    %cst = arith.constant dense<0.000000e+00> : vector<128x128xf32>
    %5 = tpu.matmul %3, %4, %cst {dimension_numbers = #tpu.dot_dimension_numbers<[1], [0], [0], [1], [0, 0, 1, 1], [], []>} : vector<128x128xf32>, vector<128x128xf32>, vector<128x128xf32> -> vector<128x128xf32>
    %c0_4 = arith.constant 0 : index
    %c0_5 = arith.constant 0 : index
    %6 = vector.load %arg7[%c0_4, %c0_5] : memref<8x128xf32, #tpu.memory_space<vmem>>, vector<8x128xf32>
    %c0_6 = arith.constant 0 : index
    %c0_7 = arith.constant 0 : index
    %7 = vector.load %arg3[%c0_6, %c0_7] : memref<8x128xf32, #tpu.memory_space<vmem>>, vector<8x128xf32>
    %cst_8 = arith.constant dense<0.000000e+00> : vector<8x128xf32>
    %8 = tpu.matmul %7, %5, %cst_8 {dimension_numbers = #tpu.dot_dimension_numbers<[1], [0], [0], [1], [0, 0, 1, 1], [], []>} : vector<8x128xf32>, vector<128x128xf32>, vector<8x128xf32> -> vector<8x128xf32>
    %9 = arith.addf %6, %8 : vector<8x128xf32>
    %c0_9 = arith.constant 0 : index
    %c0_10 = arith.constant 0 : index
    %10 = vector.load %arg7[%c0_9, %c0_10] : memref<8x128xf32, #tpu.memory_space<vmem>>, vector<8x128xf32>
    tpu.vector_store %arg7[%c0_9, %c0_10], %9 {strides = array<i32>} : memref<8x128xf32, #tpu.memory_space<vmem>>, vector<8x128xf32>,
    %c0_i32_11 = arith.constant 0 : i32
    %11 = arith.cmpi eq, %arg2, %c0_i32_11 : i32
    %12 = arith.extui %11 : i1 to i32
    %c0_i32_12 = arith.constant 0 : i32
    %13 = arith.cmpi ne, %12, %c0_i32_12 : i32
    scf.if %13 {
      %c0_13 = arith.constant 0 : index
      %c0_14 = arith.constant 0 : index
      %14 = vector.load %arg7[%c0_13, %c0_14] : memref<8x128xf32, #tpu.memory_space<vmem>>, vector<8x128xf32>
      %c0_15 = arith.constant 0 : index
      %c0_16 = arith.constant 0 : index
      %15 = vector.load %arg6[%c0_15, %c0_16] : memref<8x128xf32, #tpu.memory_space<vmem>>, vector<8x128xf32>
      tpu.vector_store %arg6[%c0_15, %c0_16], %14 {strides = array<i32>} : memref<8x128xf32, #tpu.memory_space<vmem>>, vector<8x128xf32>,
    } else {
    }
    return
  }
  func.func @transform_0(%arg0: i32, %arg1: i32, %arg2: i32) -> (i32, i32) {
    %c0_i32 = arith.constant 0 : i32
    return %arg0, %arg2 : i32, i32
  }
  func.func @transform_1(%arg0: i32, %arg1: i32, %arg2: i32) -> (i32, i32) {
    %c0_i32 = arith.constant 0 : i32
    %c0_i32_0 = arith.constant 0 : i32
    return %arg2, %c0_i32 : i32, i32
  }
  func.func @transform_2(%arg0: i32, %arg1: i32, %arg2: i32) -> (i32, i32) {
    %c0_i32 = arith.constant 0 : i32
    %c0_i32_0 = arith.constant 0 : i32
    return %c0_i32, %arg1 : i32, i32
  }
  func.func @transform_3(%arg0: i32, %arg1: i32, %arg2: i32) -> (i32, i32) {
    %c0_i32 = arith.constant 0 : i32
    return %arg0, %arg1 : i32, i32
  }
}

</mosaic_0001>

<llo_original>
// kernel: graph_convolution.1
$region0: #{graph_convolution.1}
  #allocation0 [shape = 'u32[]', space=smem, size = 0x4, offset = 0x4, fixed_abs, tag = 'smem constant byte address 0x4 - core index']
  #allocation1 [shape = 'u32[144,128]{1,0:T(1,128)}', space=vmem, size = 0x12000, scoped, tag = 'internal scratch']
  #allocation2 [shape = 'f32[8,128]{1,0:T(8,128)}', space=vmem, size = 0x1000, scoped, tag = 'scratch operand']
  %s0 = inlined_call_operand.vmem [shape: f32[8,128], index: 0, kind: input, shape index: {}]
  %s1 = inlined_call_operand.vmem [shape: f32[128,128], index: 1, kind: input, shape index: {}]
  %s2 = inlined_call_operand.vmem [shape: f32[128,128], index: 2, kind: input, shape index: {}]
  %s3 = inlined_call_operand.hbm [shape: f32[8,128], index: 3, kind: output, shape index: {}]
  %s4 = sld [smem:[#allocation0]]
  $region30: #{graph_convolution.1} parent=0
    _
  %s6 = ssub.s32 1, %s4
  %s7 = scalar_select 0, %s6, %s4
  $region1: #{graph_convolution.1} parent=0
    #allocation3 [shape = 'u8[4096]{0}', space=vmem, size = 0x1000, scoped, tag = 'output window, operand 0, single buffered']
    #allocation4 [shape = 's32[1]{0}', space=sflag, size = 0x4, scoped, tag = 'scoped memory for graph_convolution.1']
    %8 = vsyncpa [#allocation4], 0
    // Predicated region
    $region2: #{graph_convolution.1} parent=1 // pred_check
      _
    $region3: #{graph_convolution.1} parent=1 // pred_check_branch
      %10 = sbr.rel (0) target = $region5
    $region4: #{graph_convolution.1} parent=1 // pred_region
      _
    $region5: #{graph_convolution.1} parent=1 // pred_fallthru
      _
    // Predicated region
    $region6: #{graph_convolution.1} parent=1 // pred_check
      _
    $region7: #{graph_convolution.1} parent=1 // pred_check_branch
      %12 = sbr.rel (0) target = $region9
    $region8: #{graph_convolution.1} parent=1 // pred_region
      _
    $region9: #{graph_convolution.1} parent=1 // pred_fallthru
      _
    // Predicated region
    $region10: #{graph_convolution.1} parent=1 // pred_check
      _
    $region11: #{graph_convolution.1} parent=1 // pred_check_branch
      %14 = sbr.rel (0) target = $region13
    $region12: #{graph_convolution.1} parent=1 // pred_region
      _
    $region13: #{graph_convolution.1} parent=1 // pred_fallthru
      _
    %p15 = scmp.eq.s32.totalorder 0, 0
    // Predicated region
    $region14: #{graph_convolution.1} parent=1 // pred_check
      %p16 = pneg %p15
    $region15: #{graph_convolution.1} parent=1 // pred_check_branch
      %18 = sbr.rel (%p16) target = $region17
    $region16: #{graph_convolution.1} parent=1 // pred_region
      %19 = vst [vmem:[#allocation2] sm:$0xff] 0.0
    $region17: #{graph_convolution.1} parent=1 // pred_fallthru
      _
    %v20 = vld [vmem:[%s1] sm:$0xff]
    %v21 = vld [vmem:[%s1 + $0x8] sm:$0xff]
    %v22 = vld [vmem:[%s1 + $0x10] sm:$0xff]
    %v23 = vld [vmem:[%s1 + $0x18] sm:$0xff]
    %v24 = vld [vmem:[%s1 + $0x20] sm:$0xff]
    %v25 = vld [vmem:[%s1 + $0x28] sm:$0xff]
    %v26 = vld [vmem:[%s1 + $0x30] sm:$0xff]
    %v27 = vld [vmem:[%s1 + $0x38] sm:$0xff]
    %v28 = vld [vmem:[%s1 + $0x40] sm:$0xff]
    %v29 = vld [vmem:[%s1 + $0x48] sm:$0xff]
    %v30 = vld [vmem:[%s1 + $0x50] sm:$0xff]
    %v31 = vld [vmem:[%s1 + $0x58] sm:$0xff]
    %v32 = vld [vmem:[%s1 + $0x60] sm:$0xff]
    %v33 = vld [vmem:[%s1 + $0x68] sm:$0xff]
    %v34 = vld [vmem:[%s1 + $0x70] sm:$0xff]
    %v35 = vld [vmem:[%s1 + $0x78] sm:$0xff]
    %v36 = vld [vmem:[%s2] sm:$0xff]
    %v37 = vld [vmem:[%s2 + $0x8] sm:$0xff]
    %v38 = vld [vmem:[%s2 + $0x10] sm:$0xff]
    %v39 = vld [vmem:[%s2 + $0x18] sm:$0xff]
    %v40 = vld [vmem:[%s2 + $0x20] sm:$0xff]
    %v41 = vld [vmem:[%s2 + $0x28] sm:$0xff]
    %v42 = vld [vmem:[%s2 + $0x30] sm:$0xff]
    %v43 = vld [vmem:[%s2 + $0x38] sm:$0xff]
    %v44 = vld [vmem:[%s2 + $0x40] sm:$0xff]
    %v45 = vld [vmem:[%s2 + $0x48] sm:$0xff]
    %v46 = vld [vmem:[%s2 + $0x50] sm:$0xff]
    %v47 = vld [vmem:[%s2 + $0x58] sm:$0xff]
    %v48 = vld [vmem:[%s2 + $0x60] sm:$0xff]
    %v49 = vld [vmem:[%s2 + $0x68] sm:$0xff]
    %v50 = vld [vmem:[%s2 + $0x70] sm:$0xff]
    %v51 = vld [vmem:[%s2 + $0x78] sm:$0xff]
    %52 = vmatprep.subr.mxu0 0.0
    %53 = vmatpush1.msra.mxu0 %v51
    %54 = vmatprep.subr.mxu0 0.0
    %55 = vmatpush1.msra.mxu0 %v50
    %56 = vmatprep.subr.mxu0 0.0
    %57 = vmatpush1.msra.mxu0 %v49
    %58 = vmatprep.subr.mxu0 0.0
    %59 = vmatpush1.msra.mxu0 %v48
    %60 = vmatprep.subr.mxu0 0.0
    %61 = vmatpush1.msra.mxu0 %v47
    %62 = vmatprep.subr.mxu0 0.0
    %63 = vmatpush1.msra.mxu0 %v46
    %64 = vmatprep.subr.mxu0 0.0
    %65 = vmatpush1.msra.mxu0 %v45
    %66 = vmatprep.subr.mxu0 0.0
    %67 = vmatpush1.msra.mxu0 %v44
    %68 = vmatprep.subr.mxu0 0.0
    %69 = vmatpush1.msra.mxu0 %v43
    %70 = vmatprep.subr.mxu0 0.0
    %71 = vmatpush1.msra.mxu0 %v42
    %72 = vmatprep.subr.mxu0 0.0
    %73 = vmatpush1.msra.mxu0 %v41
    %74 = vmatprep.subr.mxu0 0.0
    %75 = vmatpush1.msra.mxu0 %v40
    %76 = vmatprep.subr.mxu0 0.0
    %77 = vmatpush1.msra.mxu0 %v39
    %78 = vmatprep.subr.mxu0 0.0
    %79 = vmatpush1.msra.mxu0 %v38
    %80 = vmatprep.subr.mxu0 0.0
    %81 = vmatpush1.msra.mxu0 %v37
    %82 = vmatprep.subr.mxu0 0.0
    %83 = vmatpush1.msra.mxu0 %v36
    %84 = vmatprep.subr.mxu0 0.0
    %85 = vmatpush2.msra.mxu0 0.0
    %86 = vmatprep.subr.mxu0 0.0
    %87 = vmatpush2.msra.mxu0 0.0
    %88 = vmatprep.subr.mxu0 0.0
    %89 = vmatpush2.msra.mxu0 0.0
    %90 = vmatprep.subr.mxu0 0.0
    %91 = vmatpush2.msra.mxu0 0.0
    %92 = vmatprep.subr.mxu0 0.0
    %93 = vmatpush2.msra.mxu0 0.0
    %94 = vmatprep.subr.mxu0 0.0
    %95 = vmatpush2.msra.mxu0 0.0
    %96 = vmatprep.subr.mxu0 0.0
    %97 = vmatpush2.msra.mxu0 0.0
    %98 = vmatprep.subr.mxu0 0.0
    %99 = vmatpush2.msra.mxu0 0.0
    %100 = vmatprep.subr.mxu0 0.0
    %101 = vmatpush2.msra.mxu0 0.0
    %102 = vmatprep.subr.mxu0 0.0
    %103 = vmatpush2.msra.mxu0 0.0
    %104 = vmatprep.subr.mxu0 0.0
    %105 = vmatpush2.msra.mxu0 0.0
    %106 = vmatprep.subr.mxu0 0.0
    %107 = vmatpush2.msra.mxu0 0.0
    %108 = vmatprep.subr.mxu0 0.0
    %109 = vmatpush2.msra.mxu0 0.0
    %110 = vmatprep.subr.mxu0 0.0
    %111 = vmatpush2.msra.mxu0 0.0
    %112 = vmatprep.subr.mxu0 0.0
    %113 = vmatpush2.msra.mxu0 0.0
    %114 = vmatprep.subr.mxu0 0.0
    %115 = vmatpush2.msra.mxu0 0.0
    %116 = vmatprep.mubr.f32.mxu0 0.0
    %117 = vmatmul.mubr.f32.gmra.mxu0 %v20
    %v118 = vpop.f32.mrf.mxu0
    %v119 = vadd.f32 0.0, %v118
    %v120 = vpop.f32.mrf.mxu0
    %121 = vmatprep.mubr.f32.mxu0 0.0
    %122 = vmatmul.mubr.f32.gmra.mxu0 %v21
    %v123 = vpop.f32.mrf.mxu0
    %v124 = vadd.f32 0.0, %v123
    %v125 = vpop.f32.mrf.mxu0
    %126 = vmatprep.mubr.f32.mxu0 0.0
    %127 = vmatmul.mubr.f32.gmra.mxu0 %v22
    %v128 = vpop.f32.mrf.mxu0
    %v129 = vadd.f32 0.0, %v128
    %v130 = vpop.f32.mrf.mxu0
    %131 = vmatprep.mubr.f32.mxu0 0.0
    %132 = vmatmul.mubr.f32.gmra.mxu0 %v23
    %v133 = vpop.f32.mrf.mxu0
    %v134 = vadd.f32 0.0, %v133
    %v135 = vpop.f32.mrf.mxu0
    %136 = vmatprep.mubr.f32.mxu0 0.0
    %137 = vmatmul.mubr.f32.gmra.mxu0 %v24
    %v138 = vpop.f32.mrf.mxu0
    %v139 = vadd.f32 0.0, %v138
    %v140 = vpop.f32.mrf.mxu0
    %141 = vmatprep.mubr.f32.mxu0 0.0
    %142 = vmatmul.mubr.f32.gmra.mxu0 %v25
    %v143 = vpop.f32.mrf.mxu0
    %v144 = vadd.f32 0.0, %v143
    %v145 = vpop.f32.mrf.mxu0
    %146 = vmatprep.mubr.f32.mxu0 0.0
    %147 = vmatmul.mubr.f32.gmra.mxu0 %v26
    %v148 = vpop.f32.mrf.mxu0
    %v149 = vadd.f32 0.0, %v148
    %v150 = vpop.f32.mrf.mxu0
    %151 = vmatprep.mubr.f32.mxu0 0.0
    %152 = vmatmul.mubr.f32.gmra.mxu0 %v27
    %v153 = vpop.f32.mrf.mxu0
    %v154 = vadd.f32 0.0, %v153
    %v155 = vpop.f32.mrf.mxu0
    %156 = vmatprep.mubr.f32.mxu0 0.0
    %157 = vmatmul.mubr.f32.gmra.mxu0 %v28
    %v158 = vpop.f32.mrf.mxu0
    %v159 = vadd.f32 0.0, %v158
    %v160 = vpop.f32.mrf.mxu0
    %161 = vmatprep.mubr.f32.mxu0 0.0
    %162 = vmatmul.mubr.f32.gmra.mxu0 %v29
    %v163 = vpop.f32.mrf.mxu0
    %v164 = vadd.f32 0.0, %v163
    %v165 = vpop.f32.mrf.mxu0
    %166 = vmatprep.mubr.f32.mxu0 0.0
    %167 = vmatmul.mubr.f32.gmra.mxu0 %v30
    %v168 = vpop.f32.mrf.mxu0
    %v169 = vadd.f32 0.0, %v168
    %v170 = vpop.f32.mrf.mxu0
    %171 = vmatprep.mubr.f32.mxu0 0.0
    %172 = vmatmul.mubr.f32.gmra.mxu0 %v31
    %v173 = vpop.f32.mrf.mxu0
    %v174 = vadd.f32 0.0, %v173
    %v175 = vpop.f32.mrf.mxu0
    %176 = vmatprep.mubr.f32.mxu0 0.0
    %177 = vmatmul.mubr.f32.gmra.mxu0 %v32
    %v178 = vpop.f32.mrf.mxu0
    %v179 = vadd.f32 0.0, %v178
    %v180 = vpop.f32.mrf.mxu0
    %181 = vmatprep.mubr.f32.mxu0 0.0
    %182 = vmatmul.mubr.f32.gmra.mxu0 %v33
    %v183 = vpop.f32.mrf.mxu0
    %v184 = vadd.f32 0.0, %v183
    %v185 = vpop.f32.mrf.mxu0
    %186 = vmatprep.mubr.f32.mxu0 0.0
    %187 = vmatmul.mubr.f32.gmra.mxu0 %v34
    %v188 = vpop.f32.mrf.mxu0
    %v189 = vadd.f32 0.0, %v188
    %v190 = vpop.f32.mrf.mxu0
    %191 = vmatprep.mubr.f32.mxu0 0.0
    %192 = vmatmul.mubr.f32.gmra.mxu0 %v35
    %v193 = vpop.f32.mrf.mxu0
    %v194 = vadd.f32 0.0, %v193
    %v195 = vpop.f32.mrf.mxu0
    %196 = vdwg.mxu0
    %v197 = vld [vmem:[#allocation2] sm:$0xff]
    %v198 = vld [vmem:[%s0] sm:$0xff]
    %199 = vmatprep.subr.mxu0 0.0
    %200 = vmatpush1.msra.mxu0 %v194
    %201 = vmatprep.subr.mxu0 0.0
    %202 = vmatpush1.msra.mxu0 %v189
    %203 = vmatprep.subr.mxu0 0.0
    %204 = vmatpush1.msra.mxu0 %v184
    %205 = vmatprep.subr.mxu0 0.0
    %206 = vmatpush1.msra.mxu0 %v179
    %207 = vmatprep.subr.mxu0 0.0
    %208 = vmatpush1.msra.mxu0 %v174
    %209 = vmatprep.subr.mxu0 0.0
    %210 = vmatpush1.msra.mxu0 %v169
    %211 = vmatprep.subr.mxu0 0.0
    %212 = vmatpush1.msra.mxu0 %v164
    %213 = vmatprep.subr.mxu0 0.0
    %214 = vmatpush1.msra.mxu0 %v159
    %215 = vmatprep.subr.mxu0 0.0
    %216 = vmatpush1.msra.mxu0 %v154
    %217 = vmatprep.subr.mxu0 0.0
    %218 = vmatpush1.msra.mxu0 %v149
    %219 = vmatprep.subr.mxu0 0.0
    %220 = vmatpush1.msra.mxu0 %v144
    %221 = vmatprep.subr.mxu0 0.0
    %222 = vmatpush1.msra.mxu0 %v139
    %223 = vmatprep.subr.mxu0 0.0
    %224 = vmatpush1.msra.mxu0 %v134
    %225 = vmatprep.subr.mxu0 0.0
    %226 = vmatpush1.msra.mxu0 %v129
    %227 = vmatprep.subr.mxu0 0.0
    %228 = vmatpush1.msra.mxu0 %v124
    %229 = vmatprep.subr.mxu0 0.0
    %230 = vmatpush1.msra.mxu0 %v119
    %231 = vmatprep.subr.mxu0 0.0
    %232 = vmatpush2.msra.mxu0 0.0
    %233 = vmatprep.subr.mxu0 0.0
    %234 = vmatpush2.msra.mxu0 0.0
    %235 = vmatprep.subr.mxu0 0.0
    %236 = vmatpush2.msra.mxu0 0.0
    %237 = vmatprep.subr.mxu0 0.0
    %238 = vmatpush2.msra.mxu0 0.0
    %239 = vmatprep.subr.mxu0 0.0
    %240 = vmatpush2.msra.mxu0 0.0
    %241 = vmatprep.subr.mxu0 0.0
    %242 = vmatpush2.msra.mxu0 0.0
    %243 = vmatprep.subr.mxu0 0.0
    %244 = vmatpush2.msra.mxu0 0.0
    %245 = vmatprep.subr.mxu0 0.0
    %246 = vmatpush2.msra.mxu0 0.0
    %247 = vmatprep.subr.mxu0 0.0
    %248 = vmatpush2.msra.mxu0 0.0
    %249 = vmatprep.subr.mxu0 0.0
    %250 = vmatpush2.msra.mxu0 0.0
    %251 = vmatprep.subr.mxu0 0.0
    %252 = vmatpush2.msra.mxu0 0.0
    %253 = vmatprep.subr.mxu0 0.0
    %254 = vmatpush2.msra.mxu0 0.0
    %255 = vmatprep.subr.mxu0 0.0
    %256 = vmatpush2.msra.mxu0 0.0
    %257 = vmatprep.subr.mxu0 0.0
    %258 = vmatpush2.msra.mxu0 0.0
    %259 = vmatprep.subr.mxu0 0.0
    %260 = vmatpush2.msra.mxu0 0.0
    %261 = vmatprep.subr.mxu0 0.0
    %262 = vmatpush2.msra.mxu0 0.0
    %263 = vmatprep.mubr.f32.mxu0 0.0
    %264 = vmatmul.mubr.f32.gmra.mxu0 %v198
    %v265 = vpop.f32.mrf.mxu0
    %v266 = vadd.f32 0.0, %v265
    %v267 = vpop.f32.mrf.mxu0
    %268 = vdwg.mxu0
    %v269 = vadd.f32 %v197, %v266
    %270 = vst [vmem:[#allocation2] sm:$0xff] %v269
    // Predicated region
    $region18: #{graph_convolution.1} parent=1 // pred_check
      %p271 = pneg %p15
    $region19: #{graph_convolution.1} parent=1 // pred_check_branch
      %273 = sbr.rel (%p271) target = $region21
    $region20: #{graph_convolution.1} parent=1 // pred_region
      %v274 = vld [vmem:[#allocation2] sm:$0xff]
      %275 = vst [vmem:[#allocation3] sm:$0xff] %v274
    $region21: #{graph_convolution.1} parent=1 // pred_fallthru
      _
    // Predicated region
    $region22: #{graph_convolution.1} parent=1 // pred_check
      _
    $region23: #{graph_convolution.1} parent=1 // pred_check_branch
      %277 = sbr.rel (0) target = $region25
    $region24: #{graph_convolution.1} parent=1 // pred_region
      %s279 = ssub.s32 128, 128
      %280 = vsyncadd [#allocation4], %s279
      %s282 = sshll.u32 [#allocation3], 4
      %s283 = int_to_ptr.vmem [resolvable:$true] %s282
      %285 = dma.vmem_to_hbm [thread:$0]  %s283, 128, %s3, [#allocation4]
    $region25: #{graph_convolution.1} parent=1 // pred_fallthru
      _
    // Predicated region
    $region26: #{graph_convolution.1} parent=1 // pred_check
      _
    $region27: #{graph_convolution.1} parent=1 // pred_check_branch
      %287 = sbr.rel (0) target = $region29
    $region28: #{graph_convolution.1} parent=1 // pred_region
      %288 = dma.done [#allocation4], 128
    $region29: #{graph_convolution.1} parent=1 // pred_fallthru
      _
    %289 = vsyncpa [#allocation4], 1

</llo_original>
